<compile_context>
chip_gen: v7x
topology: tpu7x:2x2x1
jax: 0.10.0
libtpu: 0.0.40
codegen_flags: <defaults>
</compile_context>

<pallas_src>
import jax
import jax.numpy as jnp
from jax.experimental import pallas as pl
from jax.experimental.pallas import tpu as pltpu

LANE = 128


def _mlp_kernel(p_ref, x_ref, o_ref):
    # p_ref: SMEM f32[12] = [w1 (4, row-major), b1 (2), w2 (4, row-major), b2 (2)]
    # x_ref: VMEM f32[2, TB]   (features on sublanes, batch on lanes)
    # o_ref: VMEM f32[2, TB]
    x0 = x_ref[0:1, :]
    x1 = x_ref[1:2, :]

    # hidden = sigmoid(x @ W1.T + b1), one output feature per row.
    h0 = jax.nn.sigmoid(p_ref[0] * x0 + p_ref[1] * x1 + p_ref[4])
    h1 = jax.nn.sigmoid(p_ref[2] * x0 + p_ref[3] * x1 + p_ref[5])

    # out = sigmoid(h @ W2.T + b2)  -- lane-dense stores.
    o_ref[0:1, :] = jax.nn.sigmoid(p_ref[6] * h0 + p_ref[7] * h1 + p_ref[10])
    o_ref[1:2, :] = jax.nn.sigmoid(p_ref[8] * h0 + p_ref[9] * h1 + p_ref[11])


def second_assignment_forward(x, w1, b1, w2, b2, tb=2048):
    """x: (B, 2) float32.  Returns (B, 2) float32, identical to the torch module."""
    B, F_in = x.shape
    assert F_in == 2

    # Lane-dense batch tiling: TB is a multiple of 128; small batches use one tile.
    tb = max(LANE, min(tb, pl.cdiv(B, LANE) * LANE))
    Bp = pl.cdiv(B, tb) * tb

    # (B, 2) -> (2, Bp): features on sublanes, batch on lanes.  Tiny host-side op
    # (same number of real bytes as x itself; no 64x-inflated padded array in HBM).
    x_t = jnp.pad(x.astype(jnp.float32).T, ((0, 0), (0, Bp - B)))

    # All weights/biases flattened into 12 SMEM scalars (pre-"transposed" in the
    # sense that the kernel never does W.T; it just reads the right scalars).
    params = jnp.concatenate(
        [
            w1.astype(jnp.float32).ravel(),
            b1.astype(jnp.float32).ravel(),
            w2.astype(jnp.float32).ravel(),
            b2.astype(jnp.float32).ravel(),
        ]
    )

    out_t = pl.pallas_call(
        _mlp_kernel,
        out_shape=jax.ShapeDtypeStruct((2, Bp), jnp.float32),
        grid=(Bp // tb,),
        in_specs=[
            pl.BlockSpec(memory_space=pltpu.MemorySpace.SMEM),  # 12 scalar params
            pl.BlockSpec((2, tb), lambda i: (0, i)),            # x batch tile
        ],
        out_specs=pl.BlockSpec((2, tb), lambda i: (0, i)),
        compiler_params=pltpu.CompilerParams(
            dimension_semantics=("parallel",),
        ),
    )(params, x_t)

    # Valid outputs are exact: no zero-padded weight columns are involved anymore
    # (padded batch lanes are simply dropped here).
    return out_t[:, :B].T


if __name__ == "__main__":
    # Deterministic parameters exactly as in SecondAssignment._initialize_weights
    w1 = jnp.array([[0.15, 0.20], [0.25, 0.30]], dtype=jnp.float32)
    b1 = jnp.array([0.35, 0.35], dtype=jnp.float32)
    w2 = jnp.array([[0.40, 0.45], [0.50, 0.55]], dtype=jnp.float32)
    b2 = jnp.array([0.60, 0.60], dtype=jnp.float32)

    # Small deterministic input batch.
    key = jax.random.PRNGKey(0)
    x = jax.random.normal(key, (4, 2), dtype=jnp.float32)

    out = second_assignment_forward(x, w1, b1, w2, b2)
    out = jax.block_until_ready(out)

    # Pure-JAX reference check (same math as the torch module's forward).
    h = jax.nn.sigmoid(x @ w1.T + b1)
    ref = jax.nn.sigmoid(h @ w2.T + b2)
    assert jnp.allclose(out, ref, atol=1e-6), (out, ref)

    # TODO(synk): the torch module also caches hidden_input/hidden_output/final_input
    # as attributes; only the returned final_output is produced here.

    print("KERNEL_OK")
</pallas_src>

<mosaic_0001>
module attributes {stable_mosaic.version = 11 : i64} {
  func.func @_mlp_kernel(%arg0: i32, %arg1: memref<12xf32, #tpu.memory_space<smem>>, %arg2: memref<2x128xf32, #tpu.memory_space<vmem>>, %arg3: memref<2x128xf32, #tpu.memory_space<vmem>>) attributes {dimension_semantics = [#tpu.dimension_semantics<parallel>], iteration_bounds = array<i64: 1>, scalar_prefetch = 0 : i64, scratch_operands = 0 : i64, tpu.core_type = #tpu.core_type<tc>, window_params = [{transform_indices = @transform_0, window_bounds = array<i64: 12>}, {transform_indices = @transform_1, window_bounds = array<i64: 2, 128>}, {transform_indices = @transform_2, window_bounds = array<i64: 2, 128>}]} {
    %c0 = arith.constant 0 : index
    %c0_0 = arith.constant 0 : index
    %0 = vector.load %arg2[%c0, %c0_0] : memref<2x128xf32, #tpu.memory_space<vmem>>, vector<1x128xf32>
    %c1 = arith.constant 1 : index
    %c0_1 = arith.constant 0 : index
    %1 = vector.load %arg2[%c1, %c0_1] : memref<2x128xf32, #tpu.memory_space<vmem>>, vector<1x128xf32>
    %c0_2 = arith.constant 0 : index
    %2 = memref.load %arg1[%c0_2] : memref<12xf32, #tpu.memory_space<smem>>
    %3 = vector.broadcast %2 : f32 to vector<1x128xf32>
    %4 = arith.mulf %3, %0 : vector<1x128xf32>
    %c1_3 = arith.constant 1 : index
    %5 = memref.load %arg1[%c1_3] : memref<12xf32, #tpu.memory_space<smem>>
    %6 = vector.broadcast %5 : f32 to vector<1x128xf32>
    %7 = arith.mulf %6, %1 : vector<1x128xf32>
    %8 = arith.addf %4, %7 : vector<1x128xf32>
    %c4 = arith.constant 4 : index
    %9 = memref.load %arg1[%c4] : memref<12xf32, #tpu.memory_space<smem>>
    %10 = vector.broadcast %9 : f32 to vector<1x128xf32>
    %11 = arith.addf %8, %10 : vector<1x128xf32>
    %12 = arith.negf %11 : vector<1x128xf32>
    %13 = math.exp %12 : vector<1x128xf32>
    %cst = arith.constant 1.000000e+00 : f32
    %14 = vector.broadcast %cst : f32 to vector<1x128xf32>
    %15 = arith.addf %14, %13 : vector<1x128xf32>
    %16 = arith.divf %14, %15 : vector<1x128xf32>
    %c2 = arith.constant 2 : index
    %17 = memref.load %arg1[%c2] : memref<12xf32, #tpu.memory_space<smem>>
    %18 = vector.broadcast %17 : f32 to vector<1x128xf32>
    %19 = arith.mulf %18, %0 : vector<1x128xf32>
    %c3 = arith.constant 3 : index
    %20 = memref.load %arg1[%c3] : memref<12xf32, #tpu.memory_space<smem>>
    %21 = vector.broadcast %20 : f32 to vector<1x128xf32>
    %22 = arith.mulf %21, %1 : vector<1x128xf32>
    %23 = arith.addf %19, %22 : vector<1x128xf32>
    %c5 = arith.constant 5 : index
    %24 = memref.load %arg1[%c5] : memref<12xf32, #tpu.memory_space<smem>>
    %25 = vector.broadcast %24 : f32 to vector<1x128xf32>
    %26 = arith.addf %23, %25 : vector<1x128xf32>
    %27 = arith.negf %26 : vector<1x128xf32>
    %28 = math.exp %27 : vector<1x128xf32>
    %cst_4 = arith.constant 1.000000e+00 : f32
    %29 = vector.broadcast %cst_4 : f32 to vector<1x128xf32>
    %30 = arith.addf %29, %28 : vector<1x128xf32>
    %31 = arith.divf %29, %30 : vector<1x128xf32>
    %c6 = arith.constant 6 : index
    %32 = memref.load %arg1[%c6] : memref<12xf32, #tpu.memory_space<smem>>
    %33 = vector.broadcast %32 : f32 to vector<1x128xf32>
    %34 = arith.mulf %33, %16 : vector<1x128xf32>
    %c7 = arith.constant 7 : index
    %35 = memref.load %arg1[%c7] : memref<12xf32, #tpu.memory_space<smem>>
    %36 = vector.broadcast %35 : f32 to vector<1x128xf32>
    %37 = arith.mulf %36, %31 : vector<1x128xf32>
    %38 = arith.addf %34, %37 : vector<1x128xf32>
    %c10 = arith.constant 10 : index
    %39 = memref.load %arg1[%c10] : memref<12xf32, #tpu.memory_space<smem>>
    %40 = vector.broadcast %39 : f32 to vector<1x128xf32>
    %41 = arith.addf %38, %40 : vector<1x128xf32>
    %42 = arith.negf %41 : vector<1x128xf32>
    %43 = math.exp %42 : vector<1x128xf32>
    %cst_5 = arith.constant 1.000000e+00 : f32
    %44 = vector.broadcast %cst_5 : f32 to vector<1x128xf32>
    %45 = arith.addf %44, %43 : vector<1x128xf32>
    %46 = arith.divf %44, %45 : vector<1x128xf32>
    %c0_6 = arith.constant 0 : index
    %c0_7 = arith.constant 0 : index
    %47 = vector.load %arg3[%c0_6, %c0_7] : memref<2x128xf32, #tpu.memory_space<vmem>>, vector<1x128xf32>
    tpu.vector_store %arg3[%c0_6, %c0_7], %46 {strides = array<i32>} : memref<2x128xf32, #tpu.memory_space<vmem>>, vector<1x128xf32>,
    %c8 = arith.constant 8 : index
    %48 = memref.load %arg1[%c8] : memref<12xf32, #tpu.memory_space<smem>>
    %49 = vector.broadcast %48 : f32 to vector<1x128xf32>
    %50 = arith.mulf %49, %16 : vector<1x128xf32>
    %c9 = arith.constant 9 : index
    %51 = memref.load %arg1[%c9] : memref<12xf32, #tpu.memory_space<smem>>
    %52 = vector.broadcast %51 : f32 to vector<1x128xf32>
    %53 = arith.mulf %52, %31 : vector<1x128xf32>
    %54 = arith.addf %50, %53 : vector<1x128xf32>
    %c11 = arith.constant 11 : index
    %55 = memref.load %arg1[%c11] : memref<12xf32, #tpu.memory_space<smem>>
    %56 = vector.broadcast %55 : f32 to vector<1x128xf32>
    %57 = arith.addf %54, %56 : vector<1x128xf32>
    %58 = arith.negf %57 : vector<1x128xf32>
    %59 = math.exp %58 : vector<1x128xf32>
    %cst_8 = arith.constant 1.000000e+00 : f32
    %60 = vector.broadcast %cst_8 : f32 to vector<1x128xf32>
    %61 = arith.addf %60, %59 : vector<1x128xf32>
    %62 = arith.divf %60, %61 : vector<1x128xf32>
    %c1_9 = arith.constant 1 : index
    %c0_10 = arith.constant 0 : index
    %63 = vector.load %arg3[%c1_9, %c0_10] : memref<2x128xf32, #tpu.memory_space<vmem>>, vector<1x128xf32>
    tpu.vector_store %arg3[%c1_9, %c0_10], %62 {strides = array<i32>} : memref<2x128xf32, #tpu.memory_space<vmem>>, vector<1x128xf32>,
    return
  }
  func.func @transform_0(%arg0: i32) -> i32 {
    %c0_i32 = arith.constant 0 : i32
    %c0_i32_0 = arith.constant 0 : i32
    return %c0_i32 : i32
  }
  func.func @transform_1(%arg0: i32) -> (i32, i32) {
    %c0_i32 = arith.constant 0 : i32
    %c0_i32_0 = arith.constant 0 : i32
    return %c0_i32, %arg0 : i32, i32
  }
  func.func @transform_2(%arg0: i32) -> (i32, i32) {
    %c0_i32 = arith.constant 0 : i32
    %c0_i32_0 = arith.constant 0 : i32
    return %c0_i32, %arg0 : i32, i32
  }
}

</mosaic_0001>

<llo_original>
// kernel: tpu_custom_call.1
$region0: #{tpu_custom_call.1}
  #allocation0 [shape = 'u32[]', space=smem, size = 0x4, offset = 0x4, fixed_abs, tag = 'smem constant byte address 0x4 - core index']
  #allocation1 [shape = 'u32[144,128]{1,0:T(1,128)}', space=vmem, size = 0x12000, scoped, tag = 'internal scratch']
  %s0 = inlined_call_operand.hbm [shape: f32[12], index: 0, kind: input, shape index: {}]
  %s1 = inlined_call_operand.vmem [shape: f32[2,128], index: 1, kind: input, shape index: {}]
  %s2 = inlined_call_operand.hbm [shape: f32[2,128], index: 2, kind: output, shape index: {}]
  %s3 = sld [smem:[#allocation0]]
  $region22: #{tpu_custom_call.1} parent=0
    _
  %s5 = ssub.s32 1, %s3
  %s6 = scalar_select 0, %s5, %s3
  $region1: #{tpu_custom_call.1} parent=0
    #allocation2 [shape = 'u8[512]{0}', space=smem, size = 0x200, scoped, tag = 'input window, operand 0, single buffered']
    #allocation3 [shape = 's32[1]{0}', space=sflag, size = 0x4, scoped, tag = 'scoped memory for tpu_custom_call.1']
    #allocation4 [shape = 's32[1]{0}', space=sflag, size = 0x4, scoped, tag = 'scoped memory for tpu_custom_call.1']
    #allocation5 [shape = 'u8[1024]{0}', space=vmem, size = 0x400, scoped, tag = 'output window, operand 0, single buffered']
    %7 = vsyncpa [#allocation4], 0
    %8 = vsyncpa [#allocation3], 0
    // Predicated region
    $region2: #{tpu_custom_call.1} parent=1 // pred_check
      _
    $region3: #{tpu_custom_call.1} parent=1 // pred_check_branch
      %10 = sbr.rel (0) target = $region5
    $region4: #{tpu_custom_call.1} parent=1 // pred_region
      %s12 = ssub.s32 16, 16
      %13 = vsyncadd [#allocation4], %s12
      %16 = dma.hbm_to_smem %s0, 16, [#allocation2], [#allocation4]
    $region5: #{tpu_custom_call.1} parent=1 // pred_fallthru
      _
    // Predicated region
    $region6: #{tpu_custom_call.1} parent=1 // pred_check
      _
    $region7: #{tpu_custom_call.1} parent=1 // pred_check_branch
      %18 = sbr.rel (0) target = $region9
    $region8: #{tpu_custom_call.1} parent=1 // pred_region
      _
    $region9: #{tpu_custom_call.1} parent=1 // pred_fallthru
      _
    // Predicated region
    $region10: #{tpu_custom_call.1} parent=1 // pred_check
      _
    $region11: #{tpu_custom_call.1} parent=1 // pred_check_branch
      %20 = sbr.rel (0) target = $region13
    $region12: #{tpu_custom_call.1} parent=1 // pred_region
      %21 = dma.done [#allocation4], 16
    $region13: #{tpu_custom_call.1} parent=1 // pred_fallthru
      _
    %22 = sfence
    %v23 = vld [vmem:[%s1] sm:$0x1]
    %v24 = vld [vmem:[%s1 + $0x1] sm:$0x1]
    %s25 = sld [smem:[#allocation2]]
    %v26 = vstv %s25
    %v27 = vmul.f32 %v26, %v23
    %s28 = sld [smem:[#allocation2 + $0x1]]
    %v29 = vstv %s28
    %v30 = vmul.f32 %v29, %v24
    %v31 = vadd.f32 %v27, %v30
    %s32 = sld [smem:[#allocation2 + $0x4]]
    %v33 = vstv %s32
    %v34 = vadd.f32 %v31, %v33
    %v35 = vxor.u32 %v34, 2147483648
    %v36 = vmul.f32 %v35, 1.442695
    %v37 = vpow.pop %v36
    %v38 = vadd.f32 %v37, 1.0
    %v39 = vrcp.pop %v38
    %v40 = vmul.f32 1.0, %v39
    %s41 = sld [smem:[#allocation2 + $0x2]]
    %v42 = vstv %s41
    %v43 = vmul.f32 %v42, %v23
    %s44 = sld [smem:[#allocation2 + $0x3]]
    %v45 = vstv %s44
    %v46 = vmul.f32 %v45, %v24
    %v47 = vadd.f32 %v43, %v46
    %s48 = sld [smem:[#allocation2 + $0x5]]
    %v49 = vstv %s48
    %v50 = vadd.f32 %v47, %v49
    %v51 = vxor.u32 %v50, 2147483648
    %v52 = vmul.f32 %v51, 1.442695
    %v53 = vpow.pop %v52
    %v54 = vadd.f32 %v53, 1.0
    %v55 = vrcp.pop %v54
    %v56 = vmul.f32 1.0, %v55
    %s57 = sld [smem:[#allocation2 + $0x6]]
    %v58 = vstv %s57
    %v59 = vmul.f32 %v58, %v40
    %s60 = sld [smem:[#allocation2 + $0x7]]
    %v61 = vstv %s60
    %v62 = vmul.f32 %v61, %v56
    %v63 = vadd.f32 %v59, %v62
    %s64 = sld [smem:[#allocation2 + $0xa]]
    %v65 = vstv %s64
    %v66 = vadd.f32 %v63, %v65
    %v67 = vxor.u32 %v66, 2147483648
    %v68 = vmul.f32 %v67, 1.442695
    %v69 = vpow.pop %v68
    %v70 = vadd.f32 %v69, 1.0
    %v71 = vrcp.pop %v70
    %v72 = vmul.f32 1.0, %v71
    %73 = vst [vmem:[#allocation5] sm:$0x1] %v72
    %s74 = sld [smem:[#allocation2 + $0x8]]
    %v75 = vstv %s74
    %v76 = vmul.f32 %v75, %v40
    %s77 = sld [smem:[#allocation2 + $0x9]]
    %v78 = vstv %s77
    %v79 = vmul.f32 %v78, %v56
    %v80 = vadd.f32 %v76, %v79
    %s81 = sld [smem:[#allocation2 + $0xb]]
    %v82 = vstv %s81
    %v83 = vadd.f32 %v80, %v82
    %v84 = vxor.u32 %v83, 2147483648
    %v85 = vmul.f32 %v84, 1.442695
    %v86 = vpow.pop %v85
    %v87 = vadd.f32 %v86, 1.0
    %v88 = vrcp.pop %v87
    %v89 = vmul.f32 1.0, %v88
    %90 = vst [vmem:[#allocation5 + $0x1] sm:$0x1] %v89
    // Predicated region
    $region14: #{tpu_custom_call.1} parent=1 // pred_check
      _
    $region15: #{tpu_custom_call.1} parent=1 // pred_check_branch
      %92 = sbr.rel (0) target = $region17
    $region16: #{tpu_custom_call.1} parent=1 // pred_region
      %s94 = ssub.s32 32, 32
      %95 = vsyncadd [#allocation3], %s94
      %s97 = sshll.u32 [#allocation5], 4
      %s98 = int_to_ptr.vmem [resolvable:$true] %s97
      %100 = dma.vmem_to_hbm [thread:$0]  %s98, 32, %s2, [#allocation3]
    $region17: #{tpu_custom_call.1} parent=1 // pred_fallthru
      _
    // Predicated region
    $region18: #{tpu_custom_call.1} parent=1 // pred_check
      _
    $region19: #{tpu_custom_call.1} parent=1 // pred_check_branch
      %102 = sbr.rel (0) target = $region21
    $region20: #{tpu_custom_call.1} parent=1 // pred_region
      %103 = dma.done [#allocation3], 32
    $region21: #{tpu_custom_call.1} parent=1 // pred_fallthru
      _
    %104 = vsyncpa [#allocation3], 1
    %105 = vsyncpa [#allocation4], 1

</llo_original>
